<compile_context>
chip_gen: v6e
topology: v6e:2x2x1
jax: 0.10.0
libtpu: 0.0.40
codegen_flags: <defaults>
</compile_context>

<pallas_src>
import math
from functools import partial

import jax
import jax.numpy as jnp
from jax.experimental import pallas as pl
from jax.experimental.pallas import tpu as pltpu

KS = 3            # kernel size
STRIDE = 1        # stride (module default)
PAD = 1           # padding (module default)
LANE = 128        # TPU lane width
SUBLANE = 8       # f32 sublane count
SMALL_CIN = 32    # below this, fold all 9 taps into the contraction dim
TARGET_ROWS = 1024  # target TH*W rows per grid step (MXU M-dim fill)


def _round_up(x, m):
    return (x + m - 1) // m * m


def _pick_th(H, W):
    """Largest TH dividing H with TH*W <= TARGET_ROWS, preferring multiples of 8."""
    budget = max(1, TARGET_ROWS // max(W, 1))
    fallback = None
    for th in range(min(H, budget), 0, -1):
        if H % th == 0:
            if th % SUBLANE == 0:
                return th
            if fallback is None:
                fallback = th
    return fallback if fallback is not None else H


def _conv3x3_kernel(x_ref, w_ref, o_ref, *, fold_all):
    """One (batch, H-tile) grid step.

    x_ref: (1, Hp, Wp, Cin)     whole padded image of this batch element
                                (resident in VMEM across the H tiles)
    w_ref: (G, Kf, Cout_blk)    tap-folded weights (resident for whole grid);
                                G=1, Kf=9*Cin on the small-Cin path,
                                G=3, Kf=3*Cin otherwise.
    o_ref: (1, TH, W, Cout_blk) output tile
    """
    TH, W, Cout_blk = o_ref.shape[1], o_ref.shape[2], o_ref.shape[3]
    Cin = x_ref.shape[3]

    h = pl.program_id(1)
    align = SUBLANE if TH % SUBLANE == 0 else TH
    row0 = pl.multiple_of(h * TH, align)

    # Halo rows for this tile: TH + 2 padded input rows, a contiguous
    # leading-dim slice of the resident image (no per-tap strided copies).
    x_tile = x_ref[0, pl.ds(row0, TH + KS - 1), :, :]            # (TH+2, Wp, Cin)

    if fold_all:
        # Small Cin: im2col over all 9 taps -> a single matmul with K = 9*Cin.
        patches = jnp.concatenate(
            [x_tile[kh:kh + TH, kw:kw + W, :]
             for kh in range(KS) for kw in range(KS)], axis=-1)  # (TH, W, 9*Cin)
        acc = jnp.dot(patches.reshape(TH * W, KS * KS * Cin), w_ref[0],
                      preferred_element_type=jnp.float32)
    else:
        # kw-folded im2col: 3 matmuls with K = 3*Cin on contiguous row slabs.
        patches = jnp.concatenate(
            [x_tile[:, kw:kw + W, :] for kw in range(KS)], axis=-1)  # (TH+2, W, 3*Cin)
        acc = jnp.zeros((TH * W, Cout_blk), dtype=jnp.float32)
        for kh in range(KS):  # static unroll
            p = patches[kh:kh + TH].reshape(TH * W, KS * Cin)
            acc = acc + jnp.dot(p, w_ref[kh],
                                preferred_element_type=jnp.float32)

    # norm_layer is None -> bn is identity and no activation is applied.
    # TODO(synk): fuse scale/shift + leaky_relu here if a norm_layer is used.
    o_ref[0] = acc.reshape(TH, W, Cout_blk).astype(o_ref.dtype)


def conv_bn_relu_forward(x_nchw, weight_oihw, *, compute_dtype=jnp.bfloat16):
    """ConvBNReLU.forward with norm_layer=None (bias-free 3x3 conv, identity bn).

    x_nchw:      (N, Cin, H, W)      float32
    weight_oihw: (Cout, Cin, KS, KS) float32 (PyTorch layout)
    returns:     (N, Cout, H, W)     float32
    """
    N, Cin, H, W = x_nchw.shape
    Cout = weight_oihw.shape[0]
    out_dtype = x_nchw.dtype

    # Small Cout: emit exactly Cout channels (full-dim last block, masked
    # stores) instead of writing a 128-padded tensor and re-reading it.
    Cout_blk = _round_up(Cout, LANE) if Cout >= LANE else Cout

    fold_all = Cin <= SMALL_CIN
    TH = _pick_th(H, W)
    Hp, Wp = H + 2 * PAD, W + 2 * PAD

    # Layout glue (NCHW -> NHWC) + zero halo in plain JAX.
    # TODO(synk): keep the surrounding model NHWC end-to-end to drop these
    # extra HBM passes around every conv.
    x_nhwc = jnp.transpose(x_nchw, (0, 2, 3, 1)).astype(compute_dtype)
    x_pad = jnp.pad(x_nhwc, ((0, 0), (PAD, PAD), (PAD, PAD), (0, 0)))

    # OIHW -> HWIO -> fold taps into the matmul contraction dim.
    w_hwio = jnp.transpose(weight_oihw, (2, 3, 1, 0))            # (KS, KS, Cin, Cout)
    if fold_all:
        G, Kf = 1, KS * KS * Cin
    else:
        G, Kf = KS, KS * Cin
    w = w_hwio.reshape(G, Kf, Cout)
    if Cout_blk != Cout:
        w = jnp.pad(w, ((0, 0), (0, 0), (0, Cout_blk - Cout)))
    w = w.astype(compute_dtype)

    grid = (N, H // TH)

    # Scoped-VMEM budget from the actual (lane/sublane padded) block footprints.
    def _pad2(shape2, dt_bytes, sub):
        s, l = shape2
        return _round_up(s, sub) * _round_up(l, LANE) * dt_bytes

    img_bytes = Hp * _pad2((Wp, Cin), 2, 16)
    w_bytes = G * _pad2((Kf, Cout_blk), 2, 16)
    out_bytes = TH * _pad2((W, Cout_blk), 4, 8)
    scratch_bytes = (TH * W) * _round_up(Cout_blk, LANE) * 4 \
        + (TH + KS - 1) * _pad2((W, Kf), 2, 16)
    vmem_need = 2 * img_bytes + 2 * w_bytes + 2 * out_bytes + scratch_bytes
    vmem_limit = int(min(max(2 * vmem_need, 32 * 1024 * 1024), 96 * 1024 * 1024))

    out = pl.pallas_call(
        partial(_conv3x3_kernel, fold_all=fold_all),
        out_shape=jax.ShapeDtypeStruct((N, H, W, Cout_blk), out_dtype),
        grid_spec=pltpu.PrefetchScalarGridSpec(
            num_scalar_prefetch=0,
            grid=grid,
            in_specs=[
                # Whole padded image of batch b: block index constant along h,
                # so it is DMA'd once per batch element and stays resident
                # while its H tiles run.
                pl.BlockSpec((1, Hp, Wp, Cin), lambda b, h: (b, 0, 0, 0)),
                # Tap-folded weights: resident for the whole grid.
                pl.BlockSpec((G, Kf, Cout_blk), lambda b, h: (0, 0, 0)),
            ],
            out_specs=pl.BlockSpec((1, TH, W, Cout_blk),
                                   lambda b, h: (b, h, 0, 0)),
        ),
        compiler_params=pltpu.CompilerParams(
            # Batch axis on the core-split axis: avoids both v7x TensorCores
            # re-DMAing the same resident image; h is a sequential tile loop.
            dimension_semantics=("parallel", "arbitrary"),
            vmem_limit_bytes=vmem_limit),
    )(x_pad, w)

    if Cout_blk != Cout:
        out = out[..., :Cout]
    return jnp.transpose(out, (0, 3, 1, 2))      # back to NCHW


def init_conv_weight(key, out_chan, in_chan, ks):
    """kaiming_normal_(a=1): gain = sqrt(2/(1+a^2)) = 1, std = 1/sqrt(fan_in)."""
    fan_in = in_chan * ks * ks
    std = 1.0 / math.sqrt(fan_in)
    return std * jax.random.normal(key, (out_chan, in_chan, ks, ks),
                                   dtype=jnp.float32)


if __name__ == "__main__":
    key = jax.random.PRNGKey(0)
    k_x, k_w = jax.random.split(key)

    N, Cin, H, W = 2, 4, 16, 16
    Cout = 8

    x = jax.random.normal(k_x, (N, Cin, H, W), dtype=jnp.float32)
    weight = init_conv_weight(k_w, Cout, Cin, KS)

    out = jax.block_until_ready(conv_bn_relu_forward(x, weight))
    assert out.shape == (N, Cout, H, W), out.shape

    # Reference: same bf16-rounded inputs through XLA's conv with f32
    # accumulation, so the check isolates kernel correctness from the
    # intended bf16 MXU cast.
    x_bf = x.astype(jnp.bfloat16).astype(jnp.float32)
    w_bf = weight.astype(jnp.bfloat16).astype(jnp.float32)
    ref = jax.lax.conv_general_dilated(
        x_bf, w_bf, window_strides=(STRIDE, STRIDE),
        padding=((PAD, PAD), (PAD, PAD)),
        dimension_numbers=("NCHW", "OIHW", "NCHW"),
        precision=jax.lax.Precision.HIGHEST)
    max_err = float(jnp.max(jnp.abs(out - ref)))
    assert bool(jnp.allclose(out, ref, atol=1e-2, rtol=1e-2)), max_err

    print("KERNEL_OK")
</pallas_src>

<mosaic_0001>
module attributes {stable_mosaic.version = 11 : i64} {
  func.func @_conv3x3_kernel(%arg0: i32, %arg1: i32, %arg2: memref<1x18x18x4xbf16, #tpu.memory_space<vmem>>, %arg3: memref<1x36x8xbf16, #tpu.memory_space<vmem>>, %arg4: memref<1x16x16x8xf32, #tpu.memory_space<vmem>>) attributes {dimension_semantics = [#tpu.dimension_semantics<parallel>, #tpu.dimension_semantics<arbitrary>], iteration_bounds = array<i64: 2, 1>, scalar_prefetch = 0 : i64, scratch_operands = 0 : i64, tpu.core_type = #tpu.core_type<tc>, window_params = [{transform_indices = @transform_0, window_bounds = array<i64: 1, 18, 18, 4>}, {pipeline_mode = #tpu.pipeline_mode<synchronous>, transform_indices = @transform_1, window_bounds = array<i64: 1, 36, 8>}, {transform_indices = @transform_2, window_bounds = array<i64: 1, 16, 16, 8>}]} {
    %c16_i32 = arith.constant 16 : i32
    %0 = arith.muli %arg1, %c16_i32 : i32
    %1 = tpu.assume_multiple %0, 8 : i32
    %c0 = arith.constant 0 : index
    %2 = arith.index_cast %1 : i32 to index
    %c0_0 = arith.constant 0 : index
    %c0_1 = arith.constant 0 : index
    %3 = vector.load %arg2[%c0, %2, %c0_0, %c0_1] : memref<1x18x18x4xbf16, #tpu.memory_space<vmem>>, vector<1x18x18x4xbf16>
    %4 = vector.shape_cast %3 : vector<1x18x18x4xbf16> to vector<18x18x4xbf16>
    %5 = vector.extract_strided_slice %4 {offsets = [0, 0, 0], sizes = [16, 16, 4], strides = [1, 1, 1]} : vector<18x18x4xbf16> to vector<16x16x4xbf16>
    %6 = vector.extract_strided_slice %4 {offsets = [0, 1, 0], sizes = [16, 16, 4], strides = [1, 1, 1]} : vector<18x18x4xbf16> to vector<16x16x4xbf16>
    %7 = vector.extract_strided_slice %4 {offsets = [0, 2, 0], sizes = [16, 16, 4], strides = [1, 1, 1]} : vector<18x18x4xbf16> to vector<16x16x4xbf16>
    %8 = vector.extract_strided_slice %4 {offsets = [1, 0, 0], sizes = [16, 16, 4], strides = [1, 1, 1]} : vector<18x18x4xbf16> to vector<16x16x4xbf16>
    %9 = vector.extract_strided_slice %4 {offsets = [1, 1, 0], sizes = [16, 16, 4], strides = [1, 1, 1]} : vector<18x18x4xbf16> to vector<16x16x4xbf16>
    %10 = vector.extract_strided_slice %4 {offsets = [1, 2, 0], sizes = [16, 16, 4], strides = [1, 1, 1]} : vector<18x18x4xbf16> to vector<16x16x4xbf16>
    %11 = vector.extract_strided_slice %4 {offsets = [2, 0, 0], sizes = [16, 16, 4], strides = [1, 1, 1]} : vector<18x18x4xbf16> to vector<16x16x4xbf16>
    %12 = vector.extract_strided_slice %4 {offsets = [2, 1, 0], sizes = [16, 16, 4], strides = [1, 1, 1]} : vector<18x18x4xbf16> to vector<16x16x4xbf16>
    %13 = vector.extract_strided_slice %4 {offsets = [2, 2, 0], sizes = [16, 16, 4], strides = [1, 1, 1]} : vector<18x18x4xbf16> to vector<16x16x4xbf16>
    %14 = tpu.concatenate %5, %6, %7, %8, %9, %10, %11, %12, %13 in 2 : vector<16x16x4xbf16>, vector<16x16x4xbf16>, vector<16x16x4xbf16>, vector<16x16x4xbf16>, vector<16x16x4xbf16>, vector<16x16x4xbf16>, vector<16x16x4xbf16>, vector<16x16x4xbf16>, vector<16x16x4xbf16> -> vector<16x16x36xbf16>
    %15 = vector.shape_cast %14 : vector<16x16x36xbf16> to vector<256x36xbf16>
    %c0_2 = arith.constant 0 : index
    %c0_3 = arith.constant 0 : index
    %c0_4 = arith.constant 0 : index
    %16 = vector.load %arg3[%c0_2, %c0_3, %c0_4] : memref<1x36x8xbf16, #tpu.memory_space<vmem>>, vector<1x36x8xbf16>
    %17 = vector.shape_cast %16 : vector<1x36x8xbf16> to vector<36x8xbf16>
    %cst = arith.constant dense<0.000000e+00> : vector<256x8xf32>
    %18 = tpu.matmul %15, %17, %cst {dimension_numbers = #tpu.dot_dimension_numbers<[1], [0], [0], [1], [0, 0, 1, 1], [], []>} : vector<256x36xbf16>, vector<36x8xbf16>, vector<256x8xf32> -> vector<256x8xf32>
    %19 = vector.shape_cast %18 : vector<256x8xf32> to vector<16x16x8xf32>
    %c0_5 = arith.constant 0 : index
    %c0_6 = arith.constant 0 : index
    %c0_7 = arith.constant 0 : index
    %c0_8 = arith.constant 0 : index
    %20 = vector.load %arg4[%c0_5, %c0_6, %c0_7, %c0_8] : memref<1x16x16x8xf32, #tpu.memory_space<vmem>>, vector<1x16x16x8xf32>
    %21 = vector.shape_cast %20 : vector<1x16x16x8xf32> to vector<16x16x8xf32>
    %22 = vector.shape_cast %19 : vector<16x16x8xf32> to vector<1x16x16x8xf32>
    tpu.vector_store %arg4[%c0_5, %c0_6, %c0_7, %c0_8], %22 {strides = array<i32>} : memref<1x16x16x8xf32, #tpu.memory_space<vmem>>, vector<1x16x16x8xf32>,
    return
  }
  func.func @transform_0(%arg0: i32, %arg1: i32) -> (i32, i32, i32, i32) {
    %c0_i32 = arith.constant 0 : i32
    %c0_i32_0 = arith.constant 0 : i32
    %c0_i32_1 = arith.constant 0 : i32
    %c0_i32_2 = arith.constant 0 : i32
    return %arg0, %c0_i32, %c0_i32_0, %c0_i32_1 : i32, i32, i32, i32
  }
  func.func @transform_1(%arg0: i32, %arg1: i32) -> (i32, i32, i32) {
    %c0_i32 = arith.constant 0 : i32
    %c0_i32_0 = arith.constant 0 : i32
    %c0_i32_1 = arith.constant 0 : i32
    %c0_i32_2 = arith.constant 0 : i32
    return %c0_i32, %c0_i32_0, %c0_i32_1 : i32, i32, i32
  }
  func.func @transform_2(%arg0: i32, %arg1: i32) -> (i32, i32, i32, i32) {
    %c0_i32 = arith.constant 0 : i32
    %c0_i32_0 = arith.constant 0 : i32
    %c0_i32_1 = arith.constant 0 : i32
    return %arg0, %arg1, %c0_i32, %c0_i32_0 : i32, i32, i32, i32
  }
}

</mosaic_0001>

<llo_original>
// kernel: tpu_custom_call.1
$region0: #{tpu_custom_call.1}
  #allocation0 [shape = 'u32[]', space=smem, size = 0x4, offset = 0x4, fixed_abs, tag = 'smem constant byte address 0x4 - core index']
  #allocation1 [shape = 'u32[144,128]{1,0:T(1,128)}', space=vmem, size = 0x12000, scoped, tag = 'internal scratch']
  %s0 = inlined_call_operand.vmem [shape: bf16[2,18,18,4], index: 0, kind: input, shape index: {}]
  %s1 = inlined_call_operand.vmem [shape: bf16[1,36,8], index: 1, kind: input, shape index: {}]
  %s2 = inlined_call_operand.vmem [shape: f32[2,16,16,8], index: 2, kind: output, shape index: {}]
  %s3 = sld [smem:[#allocation0]]
  $region41: #{tpu_custom_call.1} parent=0
    _
  %s5 = ssub.s32 1, %s3
  %s6 = scalar_select 0, %s5, %s3
  loop: start=0, step=1, limit=4
  $region2: #{tpu_custom_call.1} parent=0 // loop_pre_header
    _
  $region3: #{tpu_custom_call.1} parent=0 // loop_header
    %s8 = sphi 0, %s12
    %p9 = scmp.ge.s32.totalorder %s8, 4
    %s15 = sphi 0, %s27
    %s16 = sphi 0, %s23
    %s17 = sphi 0, %s15
    %s18 = sphi 0, %s16
    %s19 = sphi 0, %s17
    %s20 = sphi 0, %s18
    %s30 = sphi 0, %s32
    %s33 = sphi 0, %s30
    %s34 = sphi 0, %s33
    %s50 = sphi 0, %s34
    %s54 = sphi 0, %s54
    %s56 = sphi 0, %s54
    %s57 = sphi 0, %s56
    %s71 = sphi 0, %s57
    %s79 = sphi 0, %s81
    %s82 = sphi 0, %s79
    %s83 = sphi 0, %s82
    %s99 = sphi 0, %s83
  $region4: #{tpu_custom_call.1} parent=0 // loop_header_branch
    %11 = sbr.rel (%p9) target = $region8
  $region5: #{tpu_custom_call.1} parent=0 // loop_body
    %s13 = ssub.s32 %s8, 1
    %s14 = ssub.s32 %s8, 2
    %s21 = sadd.s32 1, %s16
    %p22 = scmp.ge.s32.totalorder %s21, 1
    %s23 = scalar_select %p22, 0, %s21
    %s24 = sadd.s32 1, %s15
    %s25 = scalar_select %p22, %s24, %s15
    %p26 = scmp.ge.s32.totalorder %s25, 2
    %s27 = scalar_select %p26, 0, %s25
    %s28 = ssub.s32 %s15, %s27
    %p29 = scmp.eq.s32.totalorder %s28, 0
    %s31 = sadd.s32 %s30, 1
    %s32 = scalar_select %p29, %s30, %s31
    %p35 = pneg %p29
    %p36 = scmp.eq.s32.totalorder %s8, 1
    %p37 = por %p35, %p36
    %p38 = scmp.ne.s32.totalorder %s30, %s33
    %p39 = scmp.eq.s32.totalorder %s8, 0
    %p40 = por %p38, %p39
    %p41 = scmp.ne.s32.totalorder %s30, %s33
    %p42 = scmp.eq.s32.totalorder %s13, 1
    %p43 = por %p41, %p42
    %p44 = scmp.ne.s32.totalorder %s33, %s34
    %p45 = scmp.eq.s32.totalorder %s13, 0
    %p46 = por %p44, %p45
    %p47 = scmp.ne.s32.totalorder %s33, %s34
    %p48 = scmp.eq.s32.totalorder %s14, 1
    %p49 = por %p47, %p48
    %p51 = scmp.ne.s32.totalorder %s34, %s50
    %p52 = scmp.eq.s32.totalorder %s14, 0
    %p53 = por %p51, %p52
    %s55 = sadd.s32 %s54, 1
    %p58 = scmp.eq.s32.totalorder %s8, 1
    %p59 = scmp.ne.s32.totalorder %s54, %s56
    %p60 = scmp.eq.s32.totalorder %s8, 0
    %p61 = por %p59, %p60
    %p62 = scmp.ne.s32.totalorder %s54, %s56
    %p63 = scmp.eq.s32.totalorder %s13, 1
    %p64 = por %p62, %p63
    %p65 = scmp.ne.s32.totalorder %s56, %s57
    %p66 = scmp.eq.s32.totalorder %s13, 0
    %p67 = por %p65, %p66
    %p68 = scmp.ne.s32.totalorder %s56, %s57
    %p69 = scmp.eq.s32.totalorder %s14, 1
    %p70 = por %p68, %p69
    %p72 = scmp.ne.s32.totalorder %s57, %s71
    %p73 = scmp.eq.s32.totalorder %s14, 0
    %p74 = por %p72, %p73
    %s75 = ssub.s32 %s15, %s27
    %s76 = ssub.s32 %s16, %s23
    %s77 = sor.u32 %s75, %s76
    %p78 = scmp.eq.s32.totalorder %s77, 0
    %s80 = sadd.s32 %s79, 1
    %s81 = scalar_select %p78, %s79, %s80
    %p84 = pneg %p78
    %p85 = scmp.eq.s32.totalorder %s8, 1
    %p86 = por %p84, %p85
    %p87 = scmp.ne.s32.totalorder %s79, %s82
    %p88 = scmp.eq.s32.totalorder %s8, 0
    %p89 = por %p87, %p88
    %p90 = scmp.ne.s32.totalorder %s79, %s82
    %p91 = scmp.eq.s32.totalorder %s13, 1
    %p92 = por %p90, %p91
    %p93 = scmp.ne.s32.totalorder %s82, %s83
    %p94 = scmp.eq.s32.totalorder %s13, 0
    %p95 = por %p93, %p94
    %p96 = scmp.ne.s32.totalorder %s82, %s83
    %p97 = scmp.eq.s32.totalorder %s14, 1
    %p98 = por %p96, %p97
    %p100 = scmp.ne.s32.totalorder %s83, %s99
    %p101 = scmp.eq.s32.totalorder %s14, 0
    %p102 = por %p100, %p101
    %p103 = scmp.le.s32.totalorder 1, %s8
    %p104 = scmp.lt.s32.totalorder %s8, 3
    %p105 = pnand %p103, %p104
    %p106 = pneg %p105
    // Predicated region
    $region9: #{tpu_custom_call.1} parent=5 // pred_check
      _
    $region10: #{tpu_custom_call.1} parent=5 // pred_check_branch
      %108 = sbr.rel (%p105) target = $region12
    $region11: #{tpu_custom_call.1} parent=5 // pred_region
      %s109 = ssub.s32 %s8, 1
      // Predicated region
      $region13: #{tpu_custom_call.1} parent=11 // pred_check
        %p110 = pneg %p67
      $region14: #{tpu_custom_call.1} parent=11 // pred_check_branch
        %112 = sbr.rel (%p110) target = $region16
      $region15: #{tpu_custom_call.1} parent=11 // pred_region
        _
      $region16: #{tpu_custom_call.1} parent=11 // pred_fallthru
        _
    $region12: #{tpu_custom_call.1} parent=5 // pred_fallthru
      _
    %p113 = scmp.lt.s32.totalorder %s8, 2
    // Predicated region
    $region17: #{tpu_custom_call.1} parent=5 // pred_check
      %p114 = pneg %p113
    $region18: #{tpu_custom_call.1} parent=5 // pred_check_branch
      %116 = sbr.rel (%p114) target = $region20
    $region19: #{tpu_custom_call.1} parent=5 // pred_region
      // Predicated region
      $region21: #{tpu_custom_call.1} parent=19 // pred_check
        %p117 = pneg %p40
      $region22: #{tpu_custom_call.1} parent=19 // pred_check_branch
        %119 = sbr.rel (%p117) target = $region24
      $region23: #{tpu_custom_call.1} parent=19 // pred_region
        %p120 = scmp.lt.s32.totalorder %s15, 1
        %s121 = scalar_select %p120, %s15, 1
        %s122 = smul.addr %s121, 54
        %s123 = smul.addr %s122, 4
        %s124 = scalar_lea.vmem %s0, %s123
      $region24: #{tpu_custom_call.1} parent=19 // pred_fallthru
        _
    $region20: #{tpu_custom_call.1} parent=5 // pred_fallthru
      _
    %p125 = scmp.le.s32.totalorder 1, %s8
    %p126 = scmp.lt.s32.totalorder %s8, 3
    %p127 = pnand %p125, %p126
    %p128 = pneg %p127
    // Predicated region
    $region25: #{tpu_custom_call.1} parent=5 // pred_check
      _
    $region26: #{tpu_custom_call.1} parent=5 // pred_check_branch
      %130 = sbr.rel (%p127) target = $region28
    $region27: #{tpu_custom_call.1} parent=5 // pred_region
      %s131 = ssub.s32 %s8, 1
      %p132 = scmp.lt.s32.totalorder %s17, 1
      %s133 = scalar_select %p132, %s17, 1
      %s134 = smul.addr %s133, 54
      %s135 = smul.addr %s134, 4
      %s136 = scalar_lea.vmem %s0, %s135
      %p137 = pneg %p46
      %p138 = pneg %p43
      %p139 = pneg %p67
      %p140 = pneg %p64
      %p141 = pneg %p95
      %p142 = pneg %p92
      %s143 = smul.u32 16, %s18
      %p144 = scmp.lt.s32.totalorder %s17, 1
      %s145 = scalar_select %p144, %s17, 1
      %p146 = scmp.lt.s32.totalorder %s143, 15
      %s147 = scalar_select %p146, %s143, 15
      %s148 = smul.addr %s147, 2
      %s149 = smul.addr %s145, 32
      %s150 = sadd.s32 %s148, %s149
      %s151 = smul.addr %s150, 8
      %s152 = scalar_lea.vmem %s2, %s151
      %p153 = scmp.lt.s32.totalorder %s17, 1
      %s154 = scalar_select %p153, %s17, 1
      %s155 = smul.addr %s154, 54
      %s156 = smul.addr %s155, 4
      %s157 = scalar_lea.vmem %s0, %s156
      %s158 = smul.u32 16, %s18
      %p159 = scmp.lt.s32.totalorder %s17, 1
      %s160 = scalar_select %p159, %s17, 1
      %p161 = scmp.lt.s32.totalorder %s158, 15
      %s162 = scalar_select %p161, %s158, 15
      %s163 = smul.addr %s162, 2
      %s164 = smul.addr %s160, 32
      %s165 = sadd.s32 %s163, %s164
      %s166 = smul.addr %s165, 8
      %s167 = scalar_lea.vmem %s2, %s166
      %s168 = smul.u32 16, %s18
      %s170 = smul.u32 %s18, 16
      %s171 = smul.u32 %s170, 3
      %s172 = smul.addr %s171, 4
      %s173 = scalar_lea.vmem %s157, %s172
      %v174 = vld [vmem:[%s173] sm:$0xf]
      %v175 = vld [vmem:[%s173 + $0x4] sm:$0xf]
      %v176 = vld [vmem:[%s173 + $0x8] sm:$0x1]
      %v177 = vld [vmem:[%s173 + $0xc] sm:$0xf]
      %v178 = vld [vmem:[%s173 + $0x10] sm:$0xf]
      %v179 = vld [vmem:[%s173 + $0x14] sm:$0x1]
      %v180 = vld [vmem:[%s173 + $0x18] sm:$0xf]
      %v181 = vld [vmem:[%s173 + $0x1c] sm:$0xf]
      %v182 = vld [vmem:[%s173 + $0x20] sm:$0x1]
      %v183 = vld [vmem:[%s173 + $0x24] sm:$0xf]
      %v184 = vld [vmem:[%s173 + $0x28] sm:$0xf]
      %v185 = vld [vmem:[%s173 + $0x2c] sm:$0x1]
      %v186 = vld [vmem:[%s173 + $0x30] sm:$0xf]
      %v187 = vld [vmem:[%s173 + $0x34] sm:$0xf]
      %v188 = vld [vmem:[%s173 + $0x38] sm:$0x1]
      %v189 = vld [vmem:[%s173 + $0x3c] sm:$0xf]
      %v190 = vld [vmem:[%s173 + $0x40] sm:$0xf]
      %v191 = vld [vmem:[%s173 + $0x44] sm:$0x1]
      %v192 = vld [vmem:[%s173 + $0x48] sm:$0xf]
      %v193 = vld [vmem:[%s173 + $0x4c] sm:$0xf]
      %v194 = vld [vmem:[%s173 + $0x50] sm:$0x1]
      %v195 = vld [vmem:[%s173 + $0x54] sm:$0xf]
      %v196 = vld [vmem:[%s173 + $0x58] sm:$0xf]
      %v197 = vld [vmem:[%s173 + $0x5c] sm:$0x1]
      %v198 = vld [vmem:[%s173 + $0x60] sm:$0xf]
      %v199 = vld [vmem:[%s173 + $0x64] sm:$0xf]
      %v200 = vld [vmem:[%s173 + $0x68] sm:$0x1]
      %v201 = vld [vmem:[%s173 + $0x6c] sm:$0xf]
      %v202 = vld [vmem:[%s173 + $0x70] sm:$0xf]
      %v203 = vld [vmem:[%s173 + $0x74] sm:$0x1]
      %v204 = vld [vmem:[%s173 + $0x78] sm:$0xf]
      %v205 = vld [vmem:[%s173 + $0x7c] sm:$0xf]
      %v206 = vld [vmem:[%s173 + $0x80] sm:$0x1]
      %v207 = vld [vmem:[%s173 + $0x84] sm:$0xf]
      %v208 = vld [vmem:[%s173 + $0x88] sm:$0xf]
      %v209 = vld [vmem:[%s173 + $0x8c] sm:$0x1]
      %v210 = vld [vmem:[%s173 + $0x90] sm:$0xf]
      %v211 = vld [vmem:[%s173 + $0x94] sm:$0xf]
      %v212 = vld [vmem:[%s173 + $0x98] sm:$0x1]
      %v213 = vld [vmem:[%s173 + $0x9c] sm:$0xf]
      %v214 = vld [vmem:[%s173 + $0xa0] sm:$0xf]
      %v215 = vld [vmem:[%s173 + $0xa4] sm:$0x1]
      %v216 = vld [vmem:[%s173 + $0xa8] sm:$0xf]
      %v217 = vld [vmem:[%s173 + $0xac] sm:$0xf]
      %v218 = vld [vmem:[%s173 + $0xb0] sm:$0x1]
      %v219 = vld [vmem:[%s173 + $0xb4] sm:$0xf]
      %v220 = vld [vmem:[%s173 + $0xb8] sm:$0xf]
      %v221 = vld [vmem:[%s173 + $0xbc] sm:$0x1]
      %v222 = vld [vmem:[%s173 + $0xc0] sm:$0xf]
      %v223 = vld [vmem:[%s173 + $0xc4] sm:$0xf]
      %v224 = vld [vmem:[%s173 + $0xc8] sm:$0x1]
      %v225 = vld [vmem:[%s173 + $0xcc] sm:$0xf]
      %v226 = vld [vmem:[%s173 + $0xd0] sm:$0xf]
      %v227 = vld [vmem:[%s173 + $0xd4] sm:$0x1]
      %v260 = vunpack.c.l.b16 %v174
      %v261 = vunpack.c.l.b16 %v175
      %v262 = vunpack.c.l.b16 %v177
      %v263 = vunpack.c.l.b16 %v178
      %v264 = vunpack.c.l.b16 %v180
      %v265 = vunpack.c.l.b16 %v181
      %v266 = vunpack.c.l.b16 %v183
      %v267 = vunpack.c.l.b16 %v184
      %v268 = vunpack.c.l.b16 %v186
      %v269 = vunpack.c.l.b16 %v187
      %v270 = vunpack.c.l.b16 %v189
      %v271 = vunpack.c.l.b16 %v190
      %v272 = vunpack.c.l.b16 %v192
      %v273 = vunpack.c.l.b16 %v193
      %v274 = vunpack.c.l.b16 %v195
      %v275 = vunpack.c.l.b16 %v196
      %v276 = vunpack.c.l.b16 %v198
      %v277 = vunpack.c.l.b16 %v199
      %v278 = vunpack.c.l.b16 %v201
      %v279 = vunpack.c.l.b16 %v202
      %v280 = vunpack.c.l.b16 %v204
      %v281 = vunpack.c.l.b16 %v205
      %v282 = vunpack.c.l.b16 %v207
      %v283 = vunpack.c.l.b16 %v208
      %v284 = vunpack.c.l.b16 %v210
      %v285 = vunpack.c.l.b16 %v211
      %v286 = vunpack.c.l.b16 %v213
      %v287 = vunpack.c.l.b16 %v214
      %v288 = vunpack.c.l.b16 %v216
      %v289 = vunpack.c.l.b16 %v217
      %v290 = vunpack.c.l.b16 %v219
      %v291 = vunpack.c.l.b16 %v220
      %v292 = vpack.c.b16 %v261, %v260
      %v293 = vpack.c.b16 %v263, %v262
      %v294 = vpack.c.b16 %v265, %v264
      %v295 = vpack.c.b16 %v267, %v266
      %v296 = vpack.c.b16 %v269, %v268
      %v297 = vpack.c.b16 %v271, %v270
      %v298 = vpack.c.b16 %v273, %v272
      %v299 = vpack.c.b16 %v275, %v274
      %v300 = vpack.c.b16 %v277, %v276
      %v301 = vpack.c.b16 %v279, %v278
      %v302 = vpack.c.b16 %v281, %v280
      %v303 = vpack.c.b16 %v283, %v282
      %v304 = vpack.c.b16 %v285, %v284
      %v305 = vpack.c.b16 %v287, %v286
      %v306 = vpack.c.b16 %v289, %v288
      %v307 = vpack.c.b16 %v291, %v290
      %v324 = vunpack.c.l.b16 %v176
      %v325 = vunpack.c.l.b16 %v179
      %v326 = vunpack.c.l.b16 %v182
      %v327 = vunpack.c.l.b16 %v185
      %v328 = vunpack.c.l.b16 %v188
      %v329 = vunpack.c.l.b16 %v191
      %v330 = vunpack.c.l.b16 %v194
      %v331 = vunpack.c.l.b16 %v197
      %v332 = vunpack.c.l.b16 %v200
      %v333 = vunpack.c.l.b16 %v203
      %v334 = vunpack.c.l.b16 %v206
      %v335 = vunpack.c.l.b16 %v209
      %v336 = vunpack.c.l.b16 %v212
      %v337 = vunpack.c.l.b16 %v215
      %v338 = vunpack.c.l.b16 %v218
      %v339 = vunpack.c.l.b16 %v221
      %v340 = vpack.c.b16 %v324, %v324
      %v341 = vpack.c.b16 %v325, %v325
      %v342 = vpack.c.b16 %v326, %v326
      %v343 = vpack.c.b16 %v327, %v327
      %v344 = vpack.c.b16 %v328, %v328
      %v345 = vpack.c.b16 %v329, %v329
      %v346 = vpack.c.b16 %v330, %v330
      %v347 = vpack.c.b16 %v331, %v331
      %v348 = vpack.c.b16 %v332, %v332
      %v349 = vpack.c.b16 %v333, %v333
      %v350 = vpack.c.b16 %v334, %v334
      %v351 = vpack.c.b16 %v335, %v335
      %v352 = vpack.c.b16 %v336, %v336
      %v353 = vpack.c.b16 %v337, %v337
      %v354 = vpack.c.b16 %v338, %v338
      %v355 = vpack.c.b16 %v339, %v339
      %vm356 = vsmask.f32 7424
      %v358 = vshrl.u32 %v292, 16
      %v360 = vshll.u32 %v292, 16
      %v362 = vrot.slane %v360, 1
      %v363 = vor.u32 %v358, %v362
      %v365 = vshll.u32 %v340, 16
      %v367 = vrot.slane %v365, 1
      %v368 = vsel %vm356, %v363, %v367
      %v370 = vshrl.u32 %v293, 16
      %v372 = vshll.u32 %v293, 16
      %v374 = vrot.slane %v372, 1
      %v375 = vor.u32 %v370, %v374
      %v377 = vshll.u32 %v341, 16
      %v379 = vrot.slane %v377, 1
      %v380 = vsel %vm356, %v375, %v379
      %v382 = vshrl.u32 %v294, 16
      %v384 = vshll.u32 %v294, 16
      %v386 = vrot.slane %v384, 1
      %v387 = vor.u32 %v382, %v386
      %v389 = vshll.u32 %v342, 16
      %v391 = vrot.slane %v389, 1
      %v392 = vsel %vm356, %v387, %v391
      %v394 = vshrl.u32 %v295, 16
      %v396 = vshll.u32 %v295, 16
      %v398 = vrot.slane %v396, 1
      %v399 = vor.u32 %v394, %v398
      %v401 = vshll.u32 %v343, 16
      %v403 = vrot.slane %v401, 1
      %v404 = vsel %vm356, %v399, %v403
      %v406 = vshrl.u32 %v296, 16
      %v408 = vshll.u32 %v296, 16
      %v410 = vrot.slane %v408, 1
      %v411 = vor.u32 %v406, %v410
      %v413 = vshll.u32 %v344, 16
      %v415 = vrot.slane %v413, 1
      %v416 = vsel %vm356, %v411, %v415
      %v418 = vshrl.u32 %v297, 16
      %v420 = vshll.u32 %v297, 16
      %v422 = vrot.slane %v420, 1
      %v423 = vor.u32 %v418, %v422
      %v425 = vshll.u32 %v345, 16
      %v427 = vrot.slane %v425, 1
      %v428 = vsel %vm356, %v423, %v427
      %v430 = vshrl.u32 %v298, 16
      %v432 = vshll.u32 %v298, 16
      %v434 = vrot.slane %v432, 1
      %v435 = vor.u32 %v430, %v434
      %v437 = vshll.u32 %v346, 16
      %v439 = vrot.slane %v437, 1
      %v440 = vsel %vm356, %v435, %v439
      %v442 = vshrl.u32 %v299, 16
      %v444 = vshll.u32 %v299, 16
      %v446 = vrot.slane %v444, 1
      %v447 = vor.u32 %v442, %v446
      %v449 = vshll.u32 %v347, 16
      %v451 = vrot.slane %v449, 1
      %v452 = vsel %vm356, %v447, %v451
      %v454 = vshrl.u32 %v300, 16
      %v456 = vshll.u32 %v300, 16
      %v458 = vrot.slane %v456, 1
      %v459 = vor.u32 %v454, %v458
      %v461 = vshll.u32 %v348, 16
      %v463 = vrot.slane %v461, 1
      %v464 = vsel %vm356, %v459, %v463
      %v466 = vshrl.u32 %v301, 16
      %v468 = vshll.u32 %v301, 16
      %v470 = vrot.slane %v468, 1
      %v471 = vor.u32 %v466, %v470
      %v473 = vshll.u32 %v349, 16
      %v475 = vrot.slane %v473, 1
      %v476 = vsel %vm356, %v471, %v475
      %v478 = vshrl.u32 %v302, 16
      %v480 = vshll.u32 %v302, 16
      %v482 = vrot.slane %v480, 1
      %v483 = vor.u32 %v478, %v482
      %v485 = vshll.u32 %v350, 16
      %v487 = vrot.slane %v485, 1
      %v488 = vsel %vm356, %v483, %v487
      %v490 = vshrl.u32 %v303, 16
      %v492 = vshll.u32 %v303, 16
      %v494 = vrot.slane %v492, 1
      %v495 = vor.u32 %v490, %v494
      %v497 = vshll.u32 %v351, 16
      %v499 = vrot.slane %v497, 1
      %v500 = vsel %vm356, %v495, %v499
      %v502 = vshrl.u32 %v304, 16
      %v504 = vshll.u32 %v304, 16
      %v506 = vrot.slane %v504, 1
      %v507 = vor.u32 %v502, %v506
      %v509 = vshll.u32 %v352, 16
      %v511 = vrot.slane %v509, 1
      %v512 = vsel %vm356, %v507, %v511
      %v514 = vshrl.u32 %v305, 16
      %v516 = vshll.u32 %v305, 16
      %v518 = vrot.slane %v516, 1
      %v519 = vor.u32 %v514, %v518
      %v521 = vshll.u32 %v353, 16
      %v523 = vrot.slane %v521, 1
      %v524 = vsel %vm356, %v519, %v523
      %v526 = vshrl.u32 %v306, 16
      %v528 = vshll.u32 %v306, 16
      %v530 = vrot.slane %v528, 1
      %v531 = vor.u32 %v526, %v530
      %v533 = vshll.u32 %v354, 16
      %v535 = vrot.slane %v533, 1
      %v536 = vsel %vm356, %v531, %v535
      %v538 = vshrl.u32 %v307, 16
      %v540 = vshll.u32 %v307, 16
      %v542 = vrot.slane %v540, 1
      %v543 = vor.u32 %v538, %v542
      %v545 = vshll.u32 %v355, 16
      %v547 = vrot.slane %v545, 1
      %v548 = vsel %vm356, %v543, %v547
      %549 = vrot.lane.b32.xlu0 %v368, 4
      %v550 = vpop.permute.xlu0 %549
      %551 = vrot.lane.b32.xlu0 %v380, 4
      %v552 = vpop.permute.xlu0 %551
      %553 = vrot.lane.b32.xlu0 %v392, 4
      %v554 = vpop.permute.xlu0 %553
      %555 = vrot.lane.b32.xlu0 %v404, 4
      %v556 = vpop.permute.xlu0 %555
      %557 = vrot.lane.b32.xlu0 %v416, 4
      %v558 = vpop.permute.xlu0 %557
      %559 = vrot.lane.b32.xlu0 %v428, 4
      %v560 = vpop.permute.xlu0 %559
      %561 = vrot.lane.b32.xlu0 %v440, 4
      %v562 = vpop.permute.xlu0 %561
      %563 = vrot.lane.b32.xlu0 %v452, 4
      %v564 = vpop.permute.xlu0 %563
      %565 = vrot.lane.b32.xlu0 %v464, 4
      %v566 = vpop.permute.xlu0 %565
      %567 = vrot.lane.b32.xlu0 %v476, 4
      %v568 = vpop.permute.xlu0 %567
      %569 = vrot.lane.b32.xlu0 %v488, 4
      %v570 = vpop.permute.xlu0 %569
      %571 = vrot.lane.b32.xlu0 %v500, 4
      %v572 = vpop.permute.xlu0 %571
      %573 = vrot.lane.b32.xlu0 %v512, 4
      %v574 = vpop.permute.xlu0 %573
      %575 = vrot.lane.b32.xlu0 %v524, 4
      %v576 = vpop.permute.xlu0 %575
      %577 = vrot.lane.b32.xlu0 %v536, 4
      %v578 = vpop.permute.xlu0 %577
      %579 = vrot.lane.b32.xlu0 %v548, 4
      %v580 = vpop.permute.xlu0 %579
      %vm581 = vcmask 1046528
      %v582 = vrot.slane %v292, 1
      %v583 = vrot.slane %v340, 1
      %v584 = vsel %vm581, %v582, %v583
      %v585 = vrot.slane %v293, 1
      %v586 = vrot.slane %v341, 1
      %v587 = vsel %vm581, %v585, %v586
      %v588 = vrot.slane %v294, 1
      %v589 = vrot.slane %v342, 1
      %v590 = vsel %vm581, %v588, %v589
      %v591 = vrot.slane %v295, 1
      %v592 = vrot.slane %v343, 1
      %v593 = vsel %vm581, %v591, %v592
      %v594 = vrot.slane %v296, 1
      %v595 = vrot.slane %v344, 1
      %v596 = vsel %vm581, %v594, %v595
      %v597 = vrot.slane %v297, 1
      %v598 = vrot.slane %v345, 1
      %v599 = vsel %vm581, %v597, %v598
      %v600 = vrot.slane %v298, 1
      %v601 = vrot.slane %v346, 1
      %v602 = vsel %vm581, %v600, %v601
      %v603 = vrot.slane %v299, 1
      %v604 = vrot.slane %v347, 1
      %v605 = vsel %vm581, %v603, %v604
      %v606 = vrot.slane %v300, 1
      %v607 = vrot.slane %v348, 1
      %v608 = vsel %vm581, %v606, %v607
      %v609 = vrot.slane %v301, 1
      %v610 = vrot.slane %v349, 1
      %v611 = vsel %vm581, %v609, %v610
      %v612 = vrot.slane %v302, 1
      %v613 = vrot.slane %v350, 1
      %v614 = vsel %vm581, %v612, %v613
      %v615 = vrot.slane %v303, 1
      %v616 = vrot.slane %v351, 1
      %v617 = vsel %vm581, %v615, %v616
      %v618 = vrot.slane %v304, 1
      %v619 = vrot.slane %v352, 1
      %v620 = vsel %vm581, %v618, %v619
      %v621 = vrot.slane %v305, 1
      %v622 = vrot.slane %v353, 1
      %v623 = vsel %vm581, %v621, %v622
      %v624 = vrot.slane %v306, 1
      %v625 = vrot.slane %v354, 1
      %v626 = vsel %vm581, %v624, %v625
      %v627 = vrot.slane %v307, 1
      %v628 = vrot.slane %v355, 1
      %v629 = vsel %vm581, %v627, %v628
      %630 = vrot.lane.b32.xlu0 %v584, 8
      %v631 = vpop.permute.xlu0 %630
      %632 = vrot.lane.b32.xlu0 %v587, 8
      %v633 = vpop.permute.xlu0 %632
      %634 = vrot.lane.b32.xlu0 %v590, 8
      %v635 = vpop.permute.xlu0 %634
      %636 = vrot.lane.b32.xlu0 %v593, 8
      %v637 = vpop.permute.xlu0 %636
      %638 = vrot.lane.b32.xlu0 %v596, 8
      %v639 = vpop.permute.xlu0 %638
      %640 = vrot.lane.b32.xlu0 %v599, 8
      %v641 = vpop.permute.xlu0 %640
      %642 = vrot.lane.b32.xlu0 %v602, 8
      %v643 = vpop.permute.xlu0 %642
      %644 = vrot.lane.b32.xlu0 %v605, 8
      %v645 = vpop.permute.xlu0 %644
      %646 = vrot.lane.b32.xlu0 %v608, 8
      %v647 = vpop.permute.xlu0 %646
      %648 = vrot.lane.b32.xlu0 %v611, 8
      %v649 = vpop.permute.xlu0 %648
      %650 = vrot.lane.b32.xlu0 %v614, 8
      %v651 = vpop.permute.xlu0 %650
      %652 = vrot.lane.b32.xlu0 %v617, 8
      %v653 = vpop.permute.xlu0 %652
      %654 = vrot.lane.b32.xlu0 %v620, 8
      %v655 = vpop.permute.xlu0 %654
      %656 = vrot.lane.b32.xlu0 %v623, 8
      %v657 = vpop.permute.xlu0 %656
      %658 = vrot.lane.b32.xlu0 %v626, 8
      %v659 = vpop.permute.xlu0 %658
      %660 = vrot.lane.b32.xlu0 %v629, 8
      %v661 = vpop.permute.xlu0 %660
      %v664 = vunpack.c.l.b16 %v222
      %v665 = vunpack.c.l.b16 %v223
      %v666 = vpack.c.b16 %v665, %v664
      %667 = vrot.lane.b32.xlu0 %v293, 12
      %v668 = vpop.permute.xlu0 %667
      %669 = vrot.lane.b32.xlu0 %v294, 12
      %v670 = vpop.permute.xlu0 %669
      %671 = vrot.lane.b32.xlu0 %v295, 12
      %v672 = vpop.permute.xlu0 %671
      %673 = vrot.lane.b32.xlu0 %v296, 12
      %v674 = vpop.permute.xlu0 %673
      %675 = vrot.lane.b32.xlu0 %v297, 12
      %v676 = vpop.permute.xlu0 %675
      %677 = vrot.lane.b32.xlu0 %v298, 12
      %v678 = vpop.permute.xlu0 %677
      %679 = vrot.lane.b32.xlu0 %v299, 12
      %v680 = vpop.permute.xlu0 %679
      %681 = vrot.lane.b32.xlu0 %v300, 12
      %v682 = vpop.permute.xlu0 %681
      %683 = vrot.lane.b32.xlu0 %v301, 12
      %v684 = vpop.permute.xlu0 %683
      %685 = vrot.lane.b32.xlu0 %v302, 12
      %v686 = vpop.permute.xlu0 %685
      %687 = vrot.lane.b32.xlu0 %v303, 12
      %v688 = vpop.permute.xlu0 %687
      %689 = vrot.lane.b32.xlu0 %v304, 12
      %v690 = vpop.permute.xlu0 %689
      %691 = vrot.lane.b32.xlu0 %v305, 12
      %v692 = vpop.permute.xlu0 %691
      %693 = vrot.lane.b32.xlu0 %v306, 12
      %v694 = vpop.permute.xlu0 %693
      %695 = vrot.lane.b32.xlu0 %v307, 12
      %v696 = vpop.permute.xlu0 %695
      %697 = vrot.lane.b32.xlu0 %v666, 12
      %v698 = vpop.permute.xlu0 %697
      %v700 = vunpack.c.l.b16 %v224
      %v701 = vpack.c.b16 %v700, %v700
      %v703 = vshrl.u32 %v666, 16
      %v705 = vshll.u32 %v666, 16
      %v707 = vrot.slane %v705, 1
      %v708 = vor.u32 %v703, %v707
      %v710 = vshll.u32 %v701, 16
      %v712 = vrot.slane %v710, 1
      %v713 = vsel %vm356, %v708, %v712
      %714 = vrot.lane.b32.xlu0 %v380, 16
      %v715 = vpop.permute.xlu0 %714
      %716 = vrot.lane.b32.xlu0 %v392, 16
      %v717 = vpop.permute.xlu0 %716
      %718 = vrot.lane.b32.xlu0 %v404, 16
      %v719 = vpop.permute.xlu0 %718
      %720 = vrot.lane.b32.xlu0 %v416, 16
      %v721 = vpop.permute.xlu0 %720
      %722 = vrot.lane.b32.xlu0 %v428, 16
      %v723 = vpop.permute.xlu0 %722
      %724 = vrot.lane.b32.xlu0 %v440, 16
      %v725 = vpop.permute.xlu0 %724
      %726 = vrot.lane.b32.xlu0 %v452, 16
      %v727 = vpop.permute.xlu0 %726
      %728 = vrot.lane.b32.xlu0 %v464, 16
      %v729 = vpop.permute.xlu0 %728
      %730 = vrot.lane.b32.xlu0 %v476, 16
      %v731 = vpop.permute.xlu0 %730
      %732 = vrot.lane.b32.xlu0 %v488, 16
      %v733 = vpop.permute.xlu0 %732
      %734 = vrot.lane.b32.xlu0 %v500, 16
      %v735 = vpop.permute.xlu0 %734
      %736 = vrot.lane.b32.xlu0 %v512, 16
      %v737 = vpop.permute.xlu0 %736
      %738 = vrot.lane.b32.xlu0 %v524, 16
      %v739 = vpop.permute.xlu0 %738
      %740 = vrot.lane.b32.xlu0 %v536, 16
      %v741 = vpop.permute.xlu0 %740
      %742 = vrot.lane.b32.xlu0 %v548, 16
      %v743 = vpop.permute.xlu0 %742
      %744 = vrot.lane.b32.xlu0 %v713, 16
      %v745 = vpop.permute.xlu0 %744
      %v746 = vrot.slane %v666, 1
      %v747 = vrot.slane %v701, 1
      %v748 = vsel %vm581, %v746, %v747
      %749 = vrot.lane.b32.xlu0 %v587, 20
      %v750 = vpop.permute.xlu0 %749
      %751 = vrot.lane.b32.xlu0 %v590, 20
      %v752 = vpop.permute.xlu0 %751
      %753 = vrot.lane.b32.xlu0 %v593, 20
      %v754 = vpop.permute.xlu0 %753
      %755 = vrot.lane.b32.xlu0 %v596, 20
      %v756 = vpop.permute.xlu0 %755
      %757 = vrot.lane.b32.xlu0 %v599, 20
      %v758 = vpop.permute.xlu0 %757
      %759 = vrot.lane.b32.xlu0 %v602, 20
      %v760 = vpop.permute.xlu0 %759
      %761 = vrot.lane.b32.xlu0 %v605, 20
      %v762 = vpop.permute.xlu0 %761
      %763 = vrot.lane.b32.xlu0 %v608, 20
      %v764 = vpop.permute.xlu0 %763
      %765 = vrot.lane.b32.xlu0 %v611, 20
      %v766 = vpop.permute.xlu0 %765
      %767 = vrot.lane.b32.xlu0 %v614, 20
      %v768 = vpop.permute.xlu0 %767
      %769 = vrot.lane.b32.xlu0 %v617, 20
      %v770 = vpop.permute.xlu0 %769
      %771 = vrot.lane.b32.xlu0 %v620, 20
      %v772 = vpop.permute.xlu0 %771
      %773 = vrot.lane.b32.xlu0 %v623, 20
      %v774 = vpop.permute.xlu0 %773
      %775 = vrot.lane.b32.xlu0 %v626, 20
      %v776 = vpop.permute.xlu0 %775
      %777 = vrot.lane.b32.xlu0 %v629, 20
      %v778 = vpop.permute.xlu0 %777
      %779 = vrot.lane.b32.xlu0 %v748, 20
      %v780 = vpop.permute.xlu0 %779
      %v783 = vunpack.c.l.b16 %v225
      %v784 = vunpack.c.l.b16 %v226
      %v785 = vpack.c.b16 %v784, %v783
      %786 = vrot.lane.b32.xlu0 %v294, 24
      %v787 = vpop.permute.xlu0 %786
      %788 = vrot.lane.b32.xlu0 %v295, 24
      %v789 = vpop.permute.xlu0 %788
      %790 = vrot.lane.b32.xlu0 %v296, 24
      %v791 = vpop.permute.xlu0 %790
      %792 = vrot.lane.b32.xlu0 %v297, 24
      %v793 = vpop.permute.xlu0 %792
      %794 = vrot.lane.b32.xlu0 %v298, 24
      %v795 = vpop.permute.xlu0 %794
      %796 = vrot.lane.b32.xlu0 %v299, 24
      %v797 = vpop.permute.xlu0 %796
      %798 = vrot.lane.b32.xlu0 %v300, 24
      %v799 = vpop.permute.xlu0 %798
      %800 = vrot.lane.b32.xlu0 %v301, 24
      %v801 = vpop.permute.xlu0 %800
      %802 = vrot.lane.b32.xlu0 %v302, 24
      %v803 = vpop.permute.xlu0 %802
      %804 = vrot.lane.b32.xlu0 %v303, 24
      %v805 = vpop.permute.xlu0 %804
      %806 = vrot.lane.b32.xlu0 %v304, 24
      %v807 = vpop.permute.xlu0 %806
      %808 = vrot.lane.b32.xlu0 %v305, 24
      %v809 = vpop.permute.xlu0 %808
      %810 = vrot.lane.b32.xlu0 %v306, 24
      %v811 = vpop.permute.xlu0 %810
      %812 = vrot.lane.b32.xlu0 %v307, 24
      %v813 = vpop.permute.xlu0 %812
      %814 = vrot.lane.b32.xlu0 %v666, 24
      %v815 = vpop.permute.xlu0 %814
      %816 = vrot.lane.b32.xlu0 %v785, 24
      %v817 = vpop.permute.xlu0 %816
      %v819 = vunpack.c.l.b16 %v227
      %v820 = vpack.c.b16 %v819, %v819
      %v822 = vshrl.u32 %v785, 16
      %v824 = vshll.u32 %v785, 16
      %v826 = vrot.slane %v824, 1
      %v827 = vor.u32 %v822, %v826
      %v829 = vshll.u32 %v820, 16
      %v831 = vrot.slane %v829, 1
      %v832 = vsel %vm356, %v827, %v831
      %833 = vrot.lane.b32.xlu0 %v392, 28
      %v834 = vpop.permute.xlu0 %833
      %835 = vrot.lane.b32.xlu0 %v404, 28
      %v836 = vpop.permute.xlu0 %835
      %837 = vrot.lane.b32.xlu0 %v416, 28
      %v838 = vpop.permute.xlu0 %837
      %839 = vrot.lane.b32.xlu0 %v428, 28
      %v840 = vpop.permute.xlu0 %839
      %841 = vrot.lane.b32.xlu0 %v440, 28
      %v842 = vpop.permute.xlu0 %841
      %843 = vrot.lane.b32.xlu0 %v452, 28
      %v844 = vpop.permute.xlu0 %843
      %845 = vrot.lane.b32.xlu0 %v464, 28
      %v846 = vpop.permute.xlu0 %845
      %847 = vrot.lane.b32.xlu0 %v476, 28
      %v848 = vpop.permute.xlu0 %847
      %849 = vrot.lane.b32.xlu0 %v488, 28
      %v850 = vpop.permute.xlu0 %849
      %851 = vrot.lane.b32.xlu0 %v500, 28
      %v852 = vpop.permute.xlu0 %851
      %853 = vrot.lane.b32.xlu0 %v512, 28
      %v854 = vpop.permute.xlu0 %853
      %855 = vrot.lane.b32.xlu0 %v524, 28
      %v856 = vpop.permute.xlu0 %855
      %857 = vrot.lane.b32.xlu0 %v536, 28
      %v858 = vpop.permute.xlu0 %857
      %859 = vrot.lane.b32.xlu0 %v548, 28
      %v860 = vpop.permute.xlu0 %859
      %861 = vrot.lane.b32.xlu0 %v713, 28
      %v862 = vpop.permute.xlu0 %861
      %863 = vrot.lane.b32.xlu0 %v832, 28
      %v864 = vpop.permute.xlu0 %863
      %v865 = vrot.slane %v785, 1
      %v866 = vrot.slane %v820, 1
      %v867 = vsel %vm581, %v865, %v866
      %868 = vrot.lane.b32.xlu0 %v590, 32
      %v869 = vpop.permute.xlu0 %868
      %870 = vrot.lane.b32.xlu0 %v593, 32
      %v871 = vpop.permute.xlu0 %870
      %872 = vrot.lane.b32.xlu0 %v596, 32
      %v873 = vpop.permute.xlu0 %872
      %874 = vrot.lane.b32.xlu0 %v599, 32
      %v875 = vpop.permute.xlu0 %874
      %876 = vrot.lane.b32.xlu0 %v602, 32
      %v877 = vpop.permute.xlu0 %876
      %878 = vrot.lane.b32.xlu0 %v605, 32
      %v879 = vpop.permute.xlu0 %878
      %880 = vrot.lane.b32.xlu0 %v608, 32
      %v881 = vpop.permute.xlu0 %880
      %882 = vrot.lane.b32.xlu0 %v611, 32
      %v883 = vpop.permute.xlu0 %882
      %884 = vrot.lane.b32.xlu0 %v614, 32
      %v885 = vpop.permute.xlu0 %884
      %886 = vrot.lane.b32.xlu0 %v617, 32
      %v887 = vpop.permute.xlu0 %886
      %888 = vrot.lane.b32.xlu0 %v620, 32
      %v889 = vpop.permute.xlu0 %888
      %890 = vrot.lane.b32.xlu0 %v623, 32
      %v891 = vpop.permute.xlu0 %890
      %892 = vrot.lane.b32.xlu0 %v626, 32
      %v893 = vpop.permute.xlu0 %892
      %894 = vrot.lane.b32.xlu0 %v629, 32
      %v895 = vpop.permute.xlu0 %894
      %896 = vrot.lane.b32.xlu0 %v748, 32
      %v897 = vpop.permute.xlu0 %896
      %898 = vrot.lane.b32.xlu0 %v867, 32
      %v899 = vpop.permute.xlu0 %898
      %vm900 = vcmask 31744
      %v902 = vsel %vm900, %v292, %v550
      %v904 = vsel %vm900, %v293, %v552
      %v906 = vsel %vm900, %v294, %v554
      %v908 = vsel %vm900, %v295, %v556
      %v910 = vsel %vm900, %v296, %v558
      %v912 = vsel %vm900, %v297, %v560
      %v914 = vsel %vm900, %v298, %v562
      %v916 = vsel %vm900, %v299, %v564
      %v918 = vsel %vm900, %v300, %v566
      %v920 = vsel %vm900, %v301, %v568
      %v922 = vsel %vm900, %v302, %v570
      %v924 = vsel %vm900, %v303, %v572
      %v926 = vsel %vm900, %v304, %v574
      %v928 = vsel %vm900, %v305, %v576
      %v930 = vsel %vm900, %v306, %v578
      %v932 = vsel %vm900, %v307, %v580
      %vm933 = vcmask 64512
      %v935 = vsel %vm933, %v902, %v631
      %v937 = vsel %vm933, %v904, %v633
      %v939 = vsel %vm933, %v906, %v635
      %v941 = vsel %vm933, %v908, %v637
      %v943 = vsel %vm933, %v910, %v639
      %v945 = vsel %vm933, %v912, %v641
      %v947 = vsel %vm933, %v914, %v643
      %v949 = vsel %vm933, %v916, %v645
      %v951 = vsel %vm933, %v918, %v647
      %v953 = vsel %vm933, %v920, %v649
      %v955 = vsel %vm933, %v922, %v651
      %v957 = vsel %vm933, %v924, %v653
      %v959 = vsel %vm933, %v926, %v655
      %v961 = vsel %vm933, %v928, %v657
      %v963 = vsel %vm933, %v930, %v659
      %v965 = vsel %vm933, %v932, %v661
      %vm966 = vcmask 97280
      %v968 = vsel %vm966, %v935, %v668
      %v970 = vsel %vm966, %v937, %v670
      %v972 = vsel %vm966, %v939, %v672
      %v974 = vsel %vm966, %v941, %v674
      %v976 = vsel %vm966, %v943, %v676
      %v978 = vsel %vm966, %v945, %v678
      %v980 = vsel %vm966, %v947, %v680
      %v982 = vsel %vm966, %v949, %v682
      %v984 = vsel %vm966, %v951, %v684
      %v986 = vsel %vm966, %v953, %v686
      %v988 = vsel %vm966, %v955, %v688
      %v990 = vsel %vm966, %v957, %v690
      %v992 = vsel %vm966, %v959, %v692
      %v994 = vsel %vm966, %v961, %v694
      %v996 = vsel %vm966, %v963, %v696
      %v998 = vsel %vm966, %v965, %v698
      %vm999 = vcmask 130048
      %v1001 = vsel %vm999, %v968, %v715
      %v1003 = vsel %vm999, %v970, %v717
      %v1005 = vsel %vm999, %v972, %v719
      %v1007 = vsel %vm999, %v974, %v721
      %v1009 = vsel %vm999, %v976, %v723
      %v1011 = vsel %vm999, %v978, %v725
      %v1013 = vsel %vm999, %v980, %v727
      %v1015 = vsel %vm999, %v982, %v729
      %v1017 = vsel %vm999, %v984, %v731
      %v1019 = vsel %vm999, %v986, %v733
      %v1021 = vsel %vm999, %v988, %v735
      %v1023 = vsel %vm999, %v990, %v737
      %v1025 = vsel %vm999, %v992, %v739
      %v1027 = vsel %vm999, %v994, %v741
      %v1029 = vsel %vm999, %v996, %v743
      %v1031 = vsel %vm999, %v998, %v745
      %vm1032 = vcmask 162816
      %v1034 = vsel %vm1032, %v1001, %v750
      %v1036 = vsel %vm1032, %v1003, %v752
      %v1038 = vsel %vm1032, %v1005, %v754
      %v1040 = vsel %vm1032, %v1007, %v756
      %v1042 = vsel %vm1032, %v1009, %v758
      %v1044 = vsel %vm1032, %v1011, %v760
      %v1046 = vsel %vm1032, %v1013, %v762
      %v1048 = vsel %vm1032, %v1015, %v764
      %v1050 = vsel %vm1032, %v1017, %v766
      %v1052 = vsel %vm1032, %v1019, %v768
      %v1054 = vsel %vm1032, %v1021, %v770
      %v1056 = vsel %vm1032, %v1023, %v772
      %v1058 = vsel %vm1032, %v1025, %v774
      %v1060 = vsel %vm1032, %v1027, %v776
      %v1062 = vsel %vm1032, %v1029, %v778
      %v1064 = vsel %vm1032, %v1031, %v780
      %vm1065 = vcmask 195584
      %v1067 = vsel %vm1065, %v1034, %v787
      %v1069 = vsel %vm1065, %v1036, %v789
      %v1071 = vsel %vm1065, %v1038, %v791
      %v1073 = vsel %vm1065, %v1040, %v793
      %v1075 = vsel %vm1065, %v1042, %v795
      %v1077 = vsel %vm1065, %v1044, %v797
      %v1079 = vsel %vm1065, %v1046, %v799
      %v1081 = vsel %vm1065, %v1048, %v801
      %v1083 = vsel %vm1065, %v1050, %v803
      %v1085 = vsel %vm1065, %v1052, %v805
      %v1087 = vsel %vm1065, %v1054, %v807
      %v1089 = vsel %vm1065, %v1056, %v809
      %v1091 = vsel %vm1065, %v1058, %v811
      %v1093 = vsel %vm1065, %v1060, %v813
      %v1095 = vsel %vm1065, %v1062, %v815
      %v1097 = vsel %vm1065, %v1064, %v817
      %vm1098 = vcmask 228352
      %v1100 = vsel %vm1098, %v1067, %v834
      %v1102 = vsel %vm1098, %v1069, %v836
      %v1104 = vsel %vm1098, %v1071, %v838
      %v1106 = vsel %vm1098, %v1073, %v840
      %v1108 = vsel %vm1098, %v1075, %v842
      %v1110 = vsel %vm1098, %v1077, %v844
      %v1112 = vsel %vm1098, %v1079, %v846
      %v1114 = vsel %vm1098, %v1081, %v848
      %v1116 = vsel %vm1098, %v1083, %v850
      %v1118 = vsel %vm1098, %v1085, %v852
      %v1120 = vsel %vm1098, %v1087, %v854
      %v1122 = vsel %vm1098, %v1089, %v856
      %v1124 = vsel %vm1098, %v1091, %v858
      %v1126 = vsel %vm1098, %v1093, %v860
      %v1128 = vsel %vm1098, %v1095, %v862
      %v1130 = vsel %vm1098, %v1097, %v864
      %vm1131 = vcmask 261120
      %v1133 = vsel %vm1131, %v1100, %v869
      %v1135 = vsel %vm1131, %v1102, %v871
      %v1137 = vsel %vm1131, %v1104, %v873
      %v1139 = vsel %vm1131, %v1106, %v875
      %v1141 = vsel %vm1131, %v1108, %v877
      %v1143 = vsel %vm1131, %v1110, %v879
      %v1145 = vsel %vm1131, %v1112, %v881
      %v1147 = vsel %vm1131, %v1114, %v883
      %v1149 = vsel %vm1131, %v1116, %v885
      %v1151 = vsel %vm1131, %v1118, %v887
      %v1153 = vsel %vm1131, %v1120, %v889
      %v1155 = vsel %vm1131, %v1122, %v891
      %v1157 = vsel %vm1131, %v1124, %v893
      %v1159 = vsel %vm1131, %v1126, %v895
      %v1161 = vsel %vm1131, %v1128, %v897
      %v1163 = vsel %vm1131, %v1130, %v899
      %v1164 = vld [vmem:[%s1] sm:$0xf]
      %v1165 = vld [vmem:[%s1 + $0x4] sm:$0xf]
      %v1166 = vld [vmem:[%s1 + $0x8] sm:$0xf]
      %v1167 = vld [vmem:[%s1 + $0xc] sm:$0xf]
      %v1168 = vld [vmem:[%s1 + $0x10] sm:$0x3]
      %v1174 = vunpack.c.l.b16 %v1164
      %v1175 = vunpack.c.l.b16 %v1165
      %v1176 = vunpack.c.l.b16 %v1166
      %v1177 = vunpack.c.l.b16 %v1167
      %v1178 = vunpack.c.l.b16 %v1168
      %v1179 = vpack.c.b16 %v1175, %v1174
      %v1180 = vpack.c.b16 %v1177, %v1176
      %v1181 = vpack.c.b16 %v1178, %v1178
      %vm1184 = vcmask 293888
      %v1185 = vsel %vm1184, %v1133, 0
      %v1187 = vsel %vm1184, %v1135, 0
      %v1189 = vsel %vm1184, %v1137, 0
      %v1191 = vsel %vm1184, %v1139, 0
      %v1193 = vsel %vm1184, %v1141, 0
      %v1195 = vsel %vm1184, %v1143, 0
      %v1197 = vsel %vm1184, %v1145, 0
      %v1199 = vsel %vm1184, %v1147, 0
      %v1201 = vsel %vm1184, %v1149, 0
      %v1203 = vsel %vm1184, %v1151, 0
      %v1205 = vsel %vm1184, %v1153, 0
      %v1207 = vsel %vm1184, %v1155, 0
      %v1209 = vsel %vm1184, %v1157, 0
      %v1211 = vsel %vm1184, %v1159, 0
      %v1213 = vsel %vm1184, %v1161, 0
      %v1215 = vsel %vm1184, %v1163, 0
      %vm1217 = vcmask 1041408
      %v1219 = vsel %vm1217, %v1181, 0
      %1221 = vmatprep.subr.bf16.mxu0 0
      %1222 = vmatpush1.bf16.msra.mxu0 0
      %1223 = vmatprep.subr.bf16.mxu0 0
      %1224 = vmatpush1.bf16.msra.mxu0 0
      %1225 = vmatprep.subr.bf16.mxu0 0
      %1226 = vmatpush1.bf16.msra.mxu0 0
      %1227 = vmatprep.subr.bf16.mxu0 0
      %1228 = vmatpush1.bf16.msra.mxu0 0
      %1229 = vmatprep.subr.bf16.mxu0 0
      %1230 = vmatpush1.bf16.msra.mxu0 0
      %1231 = vmatprep.subr.bf16.mxu0 0
      %1232 = vmatpush1.bf16.msra.mxu0 %v1219
      %1233 = vmatprep.subr.bf16.mxu0 0
      %1234 = vmatpush1.bf16.msra.mxu0 %v1180
      %1235 = vmatprep.subr.bf16.mxu0 0
      %1236 = vmatpush1.bf16.msra.mxu0 %v1179
      %1237 = vmatprep.subr.bf16.mxu0 0
      %1238 = vmatpush2.bf16.msra.mxu0 0
      %1239 = vmatprep.subr.bf16.mxu0 0
      %1240 = vmatpush2.bf16.msra.mxu0 0
      %1241 = vmatprep.subr.bf16.mxu0 0
      %1242 = vmatpush2.bf16.msra.mxu0 0
      %1243 = vmatprep.subr.bf16.mxu0 0
      %1244 = vmatpush2.bf16.msra.mxu0 0
      %1245 = vmatprep.subr.bf16.mxu0 0
      %1246 = vmatpush2.bf16.msra.mxu0 0
      %1247 = vmatprep.subr.bf16.mxu0 0
      %1248 = vmatpush2.bf16.msra.mxu0 0
      %1249 = vmatprep.subr.bf16.mxu0 0
      %1250 = vmatpush2.bf16.msra.mxu0 0
      %1251 = vmatprep.subr.bf16.mxu0 0
      %1252 = vmatpush2.bf16.msra.mxu0 0
      %1253 = vmatprep.mubr.bf16.mxu0 0
      %1254 = vmatmul.mubr.bf16.gmra.mxu0 %v1185
      %v1255 = vpop.f32.mrf.mxu0
      %v1256 = vadd.f32 0.0, %v1255
      %v1257 = vpop.f32.mrf.mxu0
      %v1258 = vpop.f32.mrf.mxu0
      %v1259 = vadd.f32 0.0, %v1258
      %v1260 = vpop.f32.mrf.mxu0
      %1261 = vmatprep.mubr.bf16.mxu0 0
      %1262 = vmatmul.mubr.bf16.gmra.mxu0 %v1187
      %v1263 = vpop.f32.mrf.mxu0
      %v1264 = vadd.f32 0.0, %v1263
      %v1265 = vpop.f32.mrf.mxu0
      %v1266 = vpop.f32.mrf.mxu0
      %v1267 = vadd.f32 0.0, %v1266
      %v1268 = vpop.f32.mrf.mxu0
      %1269 = vmatprep.mubr.bf16.mxu0 0
      %1270 = vmatmul.mubr.bf16.gmra.mxu0 %v1189
      %v1271 = vpop.f32.mrf.mxu0
      %v1272 = vadd.f32 0.0, %v1271
      %v1273 = vpop.f32.mrf.mxu0
      %v1274 = vpop.f32.mrf.mxu0
      %v1275 = vadd.f32 0.0, %v1274
      %v1276 = vpop.f32.mrf.mxu0
      %1277 = vmatprep.mubr.bf16.mxu0 0
      %1278 = vmatmul.mubr.bf16.gmra.mxu0 %v1191
      %v1279 = vpop.f32.mrf.mxu0
      %v1280 = vadd.f32 0.0, %v1279
      %v1281 = vpop.f32.mrf.mxu0
      %v1282 = vpop.f32.mrf.mxu0
      %v1283 = vadd.f32 0.0, %v1282
      %v1284 = vpop.f32.mrf.mxu0
      %1285 = vmatprep.mubr.bf16.mxu0 0
      %1286 = vmatmul.mubr.bf16.gmra.mxu0 %v1193
      %v1287 = vpop.f32.mrf.mxu0
      %v1288 = vadd.f32 0.0, %v1287
      %v1289 = vpop.f32.mrf.mxu0
      %v1290 = vpop.f32.mrf.mxu0
      %v1291 = vadd.f32 0.0, %v1290
      %v1292 = vpop.f32.mrf.mxu0
      %1293 = vmatprep.mubr.bf16.mxu0 0
      %1294 = vmatmul.mubr.bf16.gmra.mxu0 %v1195
      %v1295 = vpop.f32.mrf.mxu0
      %v1296 = vadd.f32 0.0, %v1295
      %v1297 = vpop.f32.mrf.mxu0
      %v1298 = vpop.f32.mrf.mxu0
      %v1299 = vadd.f32 0.0, %v1298
      %v1300 = vpop.f32.mrf.mxu0
      %1301 = vmatprep.mubr.bf16.mxu0 0
      %1302 = vmatmul.mubr.bf16.gmra.mxu0 %v1197
      %v1303 = vpop.f32.mrf.mxu0
      %v1304 = vadd.f32 0.0, %v1303
      %v1305 = vpop.f32.mrf.mxu0
      %v1306 = vpop.f32.mrf.mxu0
      %v1307 = vadd.f32 0.0, %v1306
      %v1308 = vpop.f32.mrf.mxu0
      %1309 = vmatprep.mubr.bf16.mxu0 0
      %1310 = vmatmul.mubr.bf16.gmra.mxu0 %v1199
      %v1311 = vpop.f32.mrf.mxu0
      %v1312 = vadd.f32 0.0, %v1311
      %v1313 = vpop.f32.mrf.mxu0
      %v1314 = vpop.f32.mrf.mxu0
      %v1315 = vadd.f32 0.0, %v1314
      %v1316 = vpop.f32.mrf.mxu0
      %1317 = vmatprep.mubr.bf16.mxu0 0
      %1318 = vmatmul.mubr.bf16.gmra.mxu0 %v1201
      %v1319 = vpop.f32.mrf.mxu0
      %v1320 = vadd.f32 0.0, %v1319
      %v1321 = vpop.f32.mrf.mxu0
      %v1322 = vpop.f32.mrf.mxu0
      %v1323 = vadd.f32 0.0, %v1322
      %v1324 = vpop.f32.mrf.mxu0
      %1325 = vmatprep.mubr.bf16.mxu0 0
      %1326 = vmatmul.mubr.bf16.gmra.mxu0 %v1203
      %v1327 = vpop.f32.mrf.mxu0
      %v1328 = vadd.f32 0.0, %v1327
      %v1329 = vpop.f32.mrf.mxu0
      %v1330 = vpop.f32.mrf.mxu0
      %v1331 = vadd.f32 0.0, %v1330
      %v1332 = vpop.f32.mrf.mxu0
      %1333 = vmatprep.mubr.bf16.mxu0 0
      %1334 = vmatmul.mubr.bf16.gmra.mxu0 %v1205
      %v1335 = vpop.f32.mrf.mxu0
      %v1336 = vadd.f32 0.0, %v1335
      %v1337 = vpop.f32.mrf.mxu0
      %v1338 = vpop.f32.mrf.mxu0
      %v1339 = vadd.f32 0.0, %v1338
      %v1340 = vpop.f32.mrf.mxu0
      %1341 = vmatprep.mubr.bf16.mxu0 0
      %1342 = vmatmul.mubr.bf16.gmra.mxu0 %v1207
      %v1343 = vpop.f32.mrf.mxu0
      %v1344 = vadd.f32 0.0, %v1343
      %v1345 = vpop.f32.mrf.mxu0
      %v1346 = vpop.f32.mrf.mxu0
      %v1347 = vadd.f32 0.0, %v1346
      %v1348 = vpop.f32.mrf.mxu0
      %1349 = vmatprep.mubr.bf16.mxu0 0
      %1350 = vmatmul.mubr.bf16.gmra.mxu0 %v1209
      %v1351 = vpop.f32.mrf.mxu0
      %v1352 = vadd.f32 0.0, %v1351
      %v1353 = vpop.f32.mrf.mxu0
      %v1354 = vpop.f32.mrf.mxu0
      %v1355 = vadd.f32 0.0, %v1354
      %v1356 = vpop.f32.mrf.mxu0
      %1357 = vmatprep.mubr.bf16.mxu0 0
      %1358 = vmatmul.mubr.bf16.gmra.mxu0 %v1211
      %v1359 = vpop.f32.mrf.mxu0
      %v1360 = vadd.f32 0.0, %v1359
      %v1361 = vpop.f32.mrf.mxu0
      %v1362 = vpop.f32.mrf.mxu0
      %v1363 = vadd.f32 0.0, %v1362
      %v1364 = vpop.f32.mrf.mxu0
      %1365 = vmatprep.mubr.bf16.mxu0 0
      %1366 = vmatmul.mubr.bf16.gmra.mxu0 %v1213
      %v1367 = vpop.f32.mrf.mxu0
      %v1368 = vadd.f32 0.0, %v1367
      %v1369 = vpop.f32.mrf.mxu0
      %v1370 = vpop.f32.mrf.mxu0
      %v1371 = vadd.f32 0.0, %v1370
      %v1372 = vpop.f32.mrf.mxu0
      %1373 = vmatprep.mubr.bf16.mxu0 0
      %1374 = vmatmul.mubr.bf16.gmra.mxu0 %v1215
      %v1375 = vpop.f32.mrf.mxu0
      %v1376 = vadd.f32 0.0, %v1375
      %v1377 = vpop.f32.mrf.mxu0
      %v1378 = vpop.f32.mrf.mxu0
      %v1379 = vadd.f32 0.0, %v1378
      %v1380 = vpop.f32.mrf.mxu0
      %1381 = vdwg.mxu0
      %1382 = vst.msk [vmem:[%s167] sm:$0xff] %vm933, %v1256
      %1383 = vst.msk [vmem:[%s167 + $0x8] sm:$0xff] %vm933, %v1259
      %1384 = vst.msk [vmem:[%s167 + $0x10] sm:$0xff] %vm933, %v1264
      %1385 = vst.msk [vmem:[%s167 + $0x18] sm:$0xff] %vm933, %v1267
      %1386 = vst.msk [vmem:[%s167 + $0x20] sm:$0xff] %vm933, %v1272
      %1387 = vst.msk [vmem:[%s167 + $0x28] sm:$0xff] %vm933, %v1275
      %1388 = vst.msk [vmem:[%s167 + $0x30] sm:$0xff] %vm933, %v1280
      %1389 = vst.msk [vmem:[%s167 + $0x38] sm:$0xff] %vm933, %v1283
      %1390 = vst.msk [vmem:[%s167 + $0x40] sm:$0xff] %vm933, %v1288
      %1391 = vst.msk [vmem:[%s167 + $0x48] sm:$0xff] %vm933, %v1291
      %1392 = vst.msk [vmem:[%s167 + $0x50] sm:$0xff] %vm933, %v1296
      %1393 = vst.msk [vmem:[%s167 + $0x58] sm:$0xff] %vm933, %v1299
      %1394 = vst.msk [vmem:[%s167 + $0x60] sm:$0xff] %vm933, %v1304
      %1395 = vst.msk [vmem:[%s167 + $0x68] sm:$0xff] %vm933, %v1307
      %1396 = vst.msk [vmem:[%s167 + $0x70] sm:$0xff] %vm933, %v1312
      %1397 = vst.msk [vmem:[%s167 + $0x78] sm:$0xff] %vm933, %v1315
      %1398 = vst.msk [vmem:[%s167 + $0x80] sm:$0xff] %vm933, %v1320
      %1399 = vst.msk [vmem:[%s167 + $0x88] sm:$0xff] %vm933, %v1323
      %1400 = vst.msk [vmem:[%s167 + $0x90] sm:$0xff] %vm933, %v1328
      %1401 = vst.msk [vmem:[%s167 + $0x98] sm:$0xff] %vm933, %v1331
      %1402 = vst.msk [vmem:[%s167 + $0xa0] sm:$0xff] %vm933, %v1336
      %1403 = vst.msk [vmem:[%s167 + $0xa8] sm:$0xff] %vm933, %v1339
      %1404 = vst.msk [vmem:[%s167 + $0xb0] sm:$0xff] %vm933, %v1344
      %1405 = vst.msk [vmem:[%s167 + $0xb8] sm:$0xff] %vm933, %v1347
      %1406 = vst.msk [vmem:[%s167 + $0xc0] sm:$0xff] %vm933, %v1352
      %1407 = vst.msk [vmem:[%s167 + $0xc8] sm:$0xff] %vm933, %v1355
      %1408 = vst.msk [vmem:[%s167 + $0xd0] sm:$0xff] %vm933, %v1360
      %1409 = vst.msk [vmem:[%s167 + $0xd8] sm:$0xff] %vm933, %v1363
      %1410 = vst.msk [vmem:[%s167 + $0xe0] sm:$0xff] %vm933, %v1368
      %1411 = vst.msk [vmem:[%s167 + $0xe8] sm:$0xff] %vm933, %v1371
      %1412 = vst.msk [vmem:[%s167 + $0xf0] sm:$0xff] %vm933, %v1376
      %1413 = vst.msk [vmem:[%s167 + $0xf8] sm:$0xff] %vm933, %v1379
      %s1414 = smul.u32 16, %s18
      %p1415 = scmp.lt.s32.totalorder %s17, 1
      %s1416 = scalar_select %p1415, %s17, 1
      %p1417 = scmp.lt.s32.totalorder %s1414, 15
      %s1418 = scalar_select %p1417, %s1414, 15
      %s1419 = smul.addr %s1418, 2
      %s1420 = smul.addr %s1416, 32
      %s1421 = sadd.s32 %s1419, %s1420
      %s1422 = smul.addr %s1421, 8
      %s1423 = scalar_lea.vmem %s2, %s1422
      // Predicated region
      $region29: #{tpu_custom_call.1} parent=27 // pred_check
        %p1424 = pneg %p92
      $region30: #{tpu_custom_call.1} parent=27 // pred_check_branch
        %1426 = sbr.rel (%p1424) target = $region32
      $region31: #{tpu_custom_call.1} parent=27 // pred_region
        %s1427 = smul.u32 16, %s18
      $region32: #{tpu_custom_call.1} parent=27 // pred_fallthru
        _
    $region28: #{tpu_custom_call.1} parent=5 // pred_fallthru
      _
    %p1428 = scmp.le.s32.totalorder 2, %s8
    // Predicated region
    $region33: #{tpu_custom_call.1} parent=5 // pred_check
      %p1429 = pneg %p1428
    $region34: #{tpu_custom_call.1} parent=5 // pred_check_branch
      %1431 = sbr.rel (%p1429) target = $region36
    $region35: #{tpu_custom_call.1} parent=5 // pred_region
      %s1432 = ssub.s32 %s8, 2
      // Predicated region
      $region37: #{tpu_custom_call.1} parent=35 // pred_check
        %p1433 = pneg %p98
      $region38: #{tpu_custom_call.1} parent=35 // pred_check_branch
        %1435 = sbr.rel (%p1433) target = $region40
      $region39: #{tpu_custom_call.1} parent=35 // pred_region
        %s1436 = smul.u32 16, %s20
        %p1437 = scmp.lt.s32.totalorder %s19, 1
        %s1438 = scalar_select %p1437, %s19, 1
        %p1439 = scmp.lt.s32.totalorder %s1436, 15
        %s1440 = scalar_select %p1439, %s1436, 15
        %s1441 = smul.addr %s1440, 2
        %s1442 = smul.addr %s1438, 32
        %s1443 = sadd.s32 %s1441, %s1442
        %s1444 = smul.addr %s1443, 8
        %s1445 = scalar_lea.vmem %s2, %s1444
      $region40: #{tpu_custom_call.1} parent=35 // pred_fallthru
        _
    $region36: #{tpu_custom_call.1} parent=5 // pred_fallthru
      _
  $region6: #{tpu_custom_call.1} parent=0 // loop_footer
    %s12 = sadd.s32 1, %s8
  $region7: #{tpu_custom_call.1} parent=0 // loop_footer_branch
    %7 = sbr.rel target = $region3
  $region8: #{tpu_custom_call.1} parent=0 // loop_exit
    _

</llo_original>
